<compile_context>
chip_gen: v7x
topology: tpu7x:2x2x1
jax: 0.10.0
libtpu: 0.0.40
codegen_flags: <defaults>
</compile_context>

<pallas_src>
import jax
import jax.numpy as jnp
from jax.experimental import pallas as pl
from jax.experimental.pallas import tpu as pltpu

LANES = 128


def trinomial_kernel(w_ref, x_ref, o_ref):
    # w_ref: (3,) f32 in SMEM    x_ref/o_ref: (tile_rows, 128) f32 in VMEM
    x = x_ref[...]
    w0 = w_ref[0]
    w1 = w_ref[1]
    w2 = w_ref[2]
    # Horner: w0*x + w1*x^2 + w2*x^3 == x*(w0 + x*(w1 + x*w2)) -- pure VPU FMAs.
    o_ref[...] = x * (w0 + x * (w1 + x * w2))


def univariate_trinomial_forward(x, w, *, max_tile_rows=512):
    """Evaluate the trinomial elementwise over a batch of scalar samples.

    x : (N, 1) float32   (N=1 reproduces the PyTorch module exactly)
    w : (1, 3) float32   (nn.Linear(3, 1, bias=False).weight layout)
    returns: (N,) float32, out[i] = w0*x[i] + w1*x[i]^2 + w2*x[i]^3
    """
    n = x.shape[0]
    xf = x.reshape(-1).astype(jnp.float32)

    # Pack samples into a lane-dense (rows, 128) slab, rows a multiple of the
    # tile height (and of 8 sublanes). Zero padding is harmless (poly(0)=0).
    rows = max(8, pl.cdiv(n, LANES))
    rows = ((rows + 7) // 8) * 8
    tile_rows = min(max_tile_rows, rows)
    rows = ((rows + tile_rows - 1) // tile_rows) * tile_rows
    padded = rows * LANES
    xp = jnp.pad(xf, (0, padded - n)).reshape(rows, LANES)

    w_flat = w.reshape(3).astype(jnp.float32)
    grid = (rows // tile_rows,)

    out = pl.pallas_call(
        trinomial_kernel,
        out_shape=jax.ShapeDtypeStruct((rows, LANES), jnp.float32),
        grid=grid,
        in_specs=[
            # 3 weights -> SMEM scalars (no padded VMEM tile / vector load).
            pl.BlockSpec(memory_space=pltpu.MemorySpace.SMEM),
            # lane-dense input tiles.
            pl.BlockSpec((tile_rows, LANES), lambda i: (i, 0)),
        ],
        # lane-dense output tiles -> unmasked vst (no width-1 masked stores).
        out_specs=pl.BlockSpec((tile_rows, LANES), lambda i: (i, 0)),
        compiler_params=pltpu.CompilerParams(
            dimension_semantics=("parallel",),      # shards across TCs on v7x
            vmem_limit_bytes=32 * 1024 * 1024,      # safe on v5e/v6e/v7x
        ),
    )(w_flat, xp)

    return out.reshape(-1)[:n]


if __name__ == "__main__":
    key = jax.random.PRNGKey(0)
    kx, kw, kb = jax.random.split(key, 3)

    # nn.Linear(3, 1, bias=False) weight, PyTorch-default U(-1/sqrt(3), 1/sqrt(3)).
    bound = 1.0 / jnp.sqrt(3.0)
    w = jax.random.uniform(kw, (1, 3), dtype=jnp.float32, minval=-bound, maxval=bound)

    # ---- Case 1: module-exact single sample, x: (1, 1) -> out: (1,) ----
    x1 = jax.random.normal(kx, (1, 1), dtype=jnp.float32)
    out1 = jax.block_until_ready(univariate_trinomial_forward(x1, w))
    xv = x1[0, 0]
    ref1 = (w[0, 0] * xv + w[0, 1] * xv * xv + w[0, 2] * xv * xv * xv).reshape(1)
    assert out1.shape == (1,)
    assert jnp.allclose(out1, ref1, rtol=1e-5, atol=1e-6), (out1, ref1)

    # ---- Case 2: batched samples, exercises padding + multi-step grid ----
    n = 3000
    xb = jax.random.normal(kb, (n, 1), dtype=jnp.float32)
    out2 = jax.block_until_ready(
        univariate_trinomial_forward(xb, w, max_tile_rows=8)
    )
    xf = xb.reshape(-1)
    ref2 = w[0, 0] * xf + w[0, 1] * xf * xf + w[0, 2] * xf * xf * xf
    assert out2.shape == (n,)
    assert jnp.allclose(out2, ref2, rtol=1e-5, atol=1e-5), (out2[:4], ref2[:4])

    print("KERNEL_OK")
</pallas_src>

<mosaic_0001>
module attributes {stable_mosaic.version = 11 : i64} {
  func.func @trinomial_kernel(%arg0: i32, %arg1: memref<3xf32, #tpu.memory_space<smem>>, %arg2: memref<8x128xf32, #tpu.memory_space<vmem>>, %arg3: memref<8x128xf32, #tpu.memory_space<vmem>>) attributes {dimension_semantics = [#tpu.dimension_semantics<parallel>], iteration_bounds = array<i64: 1>, scalar_prefetch = 0 : i64, scratch_operands = 0 : i64, tpu.core_type = #tpu.core_type<tc>, window_params = [{transform_indices = @transform_0, window_bounds = array<i64: 3>}, {transform_indices = @transform_1, window_bounds = array<i64: 8, 128>}, {transform_indices = @transform_2, window_bounds = array<i64: 8, 128>}]} {
    %c0 = arith.constant 0 : index
    %c0_0 = arith.constant 0 : index
    %0 = vector.load %arg2[%c0, %c0_0] : memref<8x128xf32, #tpu.memory_space<vmem>>, vector<8x128xf32>
    %c0_1 = arith.constant 0 : index
    %1 = memref.load %arg1[%c0_1] : memref<3xf32, #tpu.memory_space<smem>>
    %c1 = arith.constant 1 : index
    %2 = memref.load %arg1[%c1] : memref<3xf32, #tpu.memory_space<smem>>
    %c2 = arith.constant 2 : index
    %3 = memref.load %arg1[%c2] : memref<3xf32, #tpu.memory_space<smem>>
    %4 = vector.broadcast %3 : f32 to vector<8x128xf32>
    %5 = arith.mulf %0, %4 : vector<8x128xf32>
    %6 = vector.broadcast %2 : f32 to vector<8x128xf32>
    %7 = arith.addf %6, %5 : vector<8x128xf32>
    %8 = arith.mulf %0, %7 : vector<8x128xf32>
    %9 = vector.broadcast %1 : f32 to vector<8x128xf32>
    %10 = arith.addf %9, %8 : vector<8x128xf32>
    %11 = arith.mulf %0, %10 : vector<8x128xf32>
    %c0_2 = arith.constant 0 : index
    %c0_3 = arith.constant 0 : index
    %12 = vector.load %arg3[%c0_2, %c0_3] : memref<8x128xf32, #tpu.memory_space<vmem>>, vector<8x128xf32>
    tpu.vector_store %arg3[%c0_2, %c0_3], %11 {strides = array<i32>} : memref<8x128xf32, #tpu.memory_space<vmem>>, vector<8x128xf32>,
    return
  }
  func.func @transform_0(%arg0: i32) -> i32 {
    %c0_i32 = arith.constant 0 : i32
    %c0_i32_0 = arith.constant 0 : i32
    return %c0_i32 : i32
  }
  func.func @transform_1(%arg0: i32) -> (i32, i32) {
    %c0_i32 = arith.constant 0 : i32
    %c0_i32_0 = arith.constant 0 : i32
    return %arg0, %c0_i32 : i32, i32
  }
  func.func @transform_2(%arg0: i32) -> (i32, i32) {
    %c0_i32 = arith.constant 0 : i32
    %c0_i32_0 = arith.constant 0 : i32
    return %arg0, %c0_i32 : i32, i32
  }
}

</mosaic_0001>

<llo_original>
// kernel: tpu_custom_call.1
$region0: #{tpu_custom_call.1}
  #allocation0 [shape = 'u32[]', space=smem, size = 0x4, offset = 0x4, fixed_abs, tag = 'smem constant byte address 0x4 - core index']
  #allocation1 [shape = 'u32[144,128]{1,0:T(1,128)}', space=vmem, size = 0x12000, scoped, tag = 'internal scratch']
  %s0 = inlined_call_operand.hbm [shape: f32[3], index: 0, kind: input, shape index: {}]
  %s1 = inlined_call_operand.hbm [shape: f32[8,128], index: 1, kind: input, shape index: {}]
  %s2 = inlined_call_operand.hbm [shape: f32[8,128], index: 2, kind: output, shape index: {}]
  %s3 = sld [smem:[#allocation0]]
  $region26: #{tpu_custom_call.1} parent=0
    _
  %s5 = ssub.s32 1, %s3
  %s6 = scalar_select 0, %s5, %s3
  $region1: #{tpu_custom_call.1} parent=0
    #allocation2 [shape = 'u8[512]{0}', space=smem, size = 0x200, scoped, tag = 'input window, operand 0, single buffered']
    #allocation3 [shape = 's32[1]{0}', space=sflag, size = 0x4, scoped, tag = 'scoped memory for tpu_custom_call.1']
    #allocation4 [shape = 's32[1]{0}', space=sflag, size = 0x4, scoped, tag = 'scoped memory for tpu_custom_call.1']
    #allocation5 [shape = 's32[1]{0}', space=sflag, size = 0x4, scoped, tag = 'scoped memory for tpu_custom_call.1']
    #allocation6 [shape = 'u8[4096]{0}', space=vmem, size = 0x1000, scoped, tag = 'input window, operand 1, single buffered']
    #allocation7 [shape = 'u8[4096]{0}', space=vmem, size = 0x1000, scoped, tag = 'output window, operand 0, single buffered']
    %7 = vsyncpa [#allocation5], 0
    %8 = vsyncpa [#allocation3], 0
    %9 = vsyncpa [#allocation4], 0
    // Predicated region
    $region2: #{tpu_custom_call.1} parent=1 // pred_check
      _
    $region3: #{tpu_custom_call.1} parent=1 // pred_check_branch
      %11 = sbr.rel (0) target = $region5
    $region4: #{tpu_custom_call.1} parent=1 // pred_region
      %s13 = ssub.s32 16, 16
      %14 = vsyncadd [#allocation5], %s13
      %17 = dma.hbm_to_smem %s0, 16, [#allocation2], [#allocation5]
    $region5: #{tpu_custom_call.1} parent=1 // pred_fallthru
      _
    // Predicated region
    $region6: #{tpu_custom_call.1} parent=1 // pred_check
      _
    $region7: #{tpu_custom_call.1} parent=1 // pred_check_branch
      %19 = sbr.rel (0) target = $region9
    $region8: #{tpu_custom_call.1} parent=1 // pred_region
      %s21 = ssub.s32 128, 128
      %22 = vsyncadd [#allocation3], %s21
      %s24 = sshll.u32 [#allocation6], 4
      %s25 = int_to_ptr.vmem [resolvable:$true] %s24
      %27 = dma.hbm_to_vmem [thread:$0]  %s1, 128, %s25, [#allocation3]
    $region9: #{tpu_custom_call.1} parent=1 // pred_fallthru
      _
    // Predicated region
    $region10: #{tpu_custom_call.1} parent=1 // pred_check
      _
    $region11: #{tpu_custom_call.1} parent=1 // pred_check_branch
      %29 = sbr.rel (0) target = $region13
    $region12: #{tpu_custom_call.1} parent=1 // pred_region
      %30 = dma.done [#allocation5], 16
    $region13: #{tpu_custom_call.1} parent=1 // pred_fallthru
      _
    // Predicated region
    $region14: #{tpu_custom_call.1} parent=1 // pred_check
      _
    $region15: #{tpu_custom_call.1} parent=1 // pred_check_branch
      %32 = sbr.rel (0) target = $region17
    $region16: #{tpu_custom_call.1} parent=1 // pred_region
      %33 = dma.done [#allocation3], 128
    $region17: #{tpu_custom_call.1} parent=1 // pred_fallthru
      _
    %34 = sfence
    %v35 = vld [vmem:[#allocation6] sm:$0xff]
    %s36 = sld [smem:[#allocation2]]
    %s37 = sld [smem:[#allocation2 + $0x1]]
    %s38 = sld [smem:[#allocation2 + $0x2]]
    %v39 = vstv %s38
    %v40 = vmul.f32 %v35, %v39
    %v41 = vstv %s37
    %v42 = vadd.f32 %v41, %v40
    %v43 = vmul.f32 %v35, %v42
    %v44 = vstv %s36
    %v45 = vadd.f32 %v44, %v43
    %v46 = vmul.f32 %v35, %v45
    %47 = vst [vmem:[#allocation7] sm:$0xff] %v46
    // Predicated region
    $region18: #{tpu_custom_call.1} parent=1 // pred_check
      _
    $region19: #{tpu_custom_call.1} parent=1 // pred_check_branch
      %49 = sbr.rel (0) target = $region21
    $region20: #{tpu_custom_call.1} parent=1 // pred_region
      %s51 = ssub.s32 128, 128
      %52 = vsyncadd [#allocation4], %s51
      %s54 = sshll.u32 [#allocation7], 4
      %s55 = int_to_ptr.vmem [resolvable:$true] %s54
      %57 = dma.vmem_to_hbm [thread:$0]  %s55, 128, %s2, [#allocation4]
    $region21: #{tpu_custom_call.1} parent=1 // pred_fallthru
      _
    // Predicated region
    $region22: #{tpu_custom_call.1} parent=1 // pred_check
      _
    $region23: #{tpu_custom_call.1} parent=1 // pred_check_branch
      %59 = sbr.rel (0) target = $region25
    $region24: #{tpu_custom_call.1} parent=1 // pred_region
      %60 = dma.done [#allocation4], 128
    $region25: #{tpu_custom_call.1} parent=1 // pred_fallthru
      _
    %61 = vsyncpa [#allocation3], 1
    %62 = vsyncpa [#allocation4], 1
    %63 = vsyncpa [#allocation5], 1

</llo_original>
